<compile_context>
chip_gen: v7x
topology: tpu7x:2x2x1
jax: 0.10.0
libtpu: 0.0.40
codegen_flags: <defaults>
</compile_context>

<pallas_src>
import functools

import jax
import jax.numpy as jnp
from jax.experimental import pallas as pl
from jax.experimental.pallas import tpu as pltpu


def _round_up(x, m):
    return (x + m - 1) // m * m


def _make_kernel(*, NB, d_in, d_in_p, L, L_out, K, padding, with_shortcut):
    """Fused shortcut-add + in-VMEM padding + im2col-stack + single matmul."""

    def kernel(*refs):
        if with_shortcut:
            x_ref, s_ref, w_ref, b_ref, o_ref, xpad_scr, stack_scr = refs
        else:
            x_ref, w_ref, b_ref, o_ref, xpad_scr, stack_scr = refs
            s_ref = None

        # Zero once per grid step: the length-padding columns and the
        # channel-padding rows (d_in..d_in_p-1) stay zero for every batch b,
        # since only the [0:d_in, padding:padding+L] window is overwritten.
        xpad_scr[...] = jnp.zeros_like(xpad_scr)

        for b in range(NB):                       # small static unroll
            xb = x_ref[b]
            if with_shortcut:
                xb = xb + s_ref[b]                # fused shortcut add (f32, VPU)
            # In-VMEM zero padding of the length axis + channel pad to 8.
            xpad_scr[0:d_in, padding:padding + L] = xb.astype(xpad_scr.dtype)
            # im2col: stack the K lane-shifted views so the conv becomes one
            # matmul with contraction width K*d_in_p. These small copies use
            # otherwise-idle load/store slots, not the MXU.
            for k in range(K):
                stack_scr[k * d_in_p:(k + 1) * d_in_p,
                          b * L_out:(b + 1) * L_out] = (
                    xpad_scr[:, k:k + L_out].astype(stack_scr.dtype))

        # One MXU matmul covering all K taps and all NB batches of this step.
        acc = jnp.dot(w_ref[...], stack_scr[...],
                      preferred_element_type=jnp.float32)
        acc = acc + b_ref[...]                    # f32 bias add

        for b in range(NB):
            o_ref[b] = acc[:, b * L_out:(b + 1) * L_out].astype(o_ref.dtype)

    return kernel


@functools.partial(jax.jit,
                   static_argnames=("padding", "with_shortcut", "matmul_dtype"))
def conv_end_layer(x, shortcut, weight, bias, *, padding, with_shortcut,
                   matmul_dtype=None):
    """Pallas implementation of ConvEndLayer.forward.

    x, shortcut: (N, d_in, L) float32
    weight:      (d_out, d_in, K) float32 (PyTorch Conv1d layout)
    bias:        (d_out,) float32
    matmul_dtype: optional dtype for the MXU operands (e.g. jnp.bfloat16 on
                  v6e/v7x); accumulation is always f32.
    """
    N, d_in, L = x.shape
    d_out, _, K = weight.shape
    L_pad = L + 2 * padding
    L_out = L_pad - K + 1
    d_in_p = _round_up(d_in, 8)                   # f32 sublane multiple
    mm_dtype = x.dtype if matmul_dtype is None else matmul_dtype

    # Batches per grid step: fold batches into the lane axis of one matmul,
    # but keep >= 2 grid steps when possible so v7x's two TensorCores both
    # get work under dimension_semantics=("parallel",).
    NB = max(1, min(8, pl.cdiv(N, 2)))
    n_steps = pl.cdiv(N, NB)

    # Flatten weight so w_flat[o, k*d_in_p + i] = weight[o, i, k] (zero-padded
    # on the channel axis). Weights are tiny; this one-time HBM cost replaces
    # the per-call jnp.pad of the activations that was removed.
    w_pad = jnp.pad(weight, ((0, 0), (0, d_in_p - d_in), (0, 0)))
    w_flat = jnp.transpose(w_pad, (0, 2, 1)).reshape(d_out, K * d_in_p)
    w_flat = w_flat.astype(mm_dtype)
    b2 = bias.reshape(d_out, 1).astype(jnp.float32)

    kernel = _make_kernel(NB=NB, d_in=d_in, d_in_p=d_in_p, L=L, L_out=L_out,
                          K=K, padding=padding, with_shortcut=with_shortcut)

    x_spec = pl.BlockSpec((NB, d_in, L), lambda n: (n, 0, 0))
    w_spec = pl.BlockSpec((d_out, K * d_in_p), lambda n: (0, 0))
    b_spec = pl.BlockSpec((d_out, 1), lambda n: (0, 0))
    o_spec = pl.BlockSpec((NB, d_out, L_out), lambda n: (n, 0, 0))
    in_specs = [x_spec] + ([x_spec] if with_shortcut else []) + [w_spec, b_spec]

    scratch_shapes = [
        pltpu.VMEM((d_in_p, L_pad), jnp.float32),        # zero-padded input slab
        pltpu.VMEM((K * d_in_p, NB * L_out), mm_dtype),  # im2col matmul operand
    ]

    itemsize = jnp.dtype(x.dtype).itemsize
    bytes_accessed = (x.size + (shortcut.size if with_shortcut else 0)) * itemsize
    bytes_accessed += (w_flat.size * jnp.dtype(mm_dtype).itemsize
                       + bias.size * 4
                       + N * d_out * L_out * itemsize)
    cost = pl.CostEstimate(flops=2 * N * d_out * d_in * K * L_out,
                           transcendentals=0,
                           bytes_accessed=int(bytes_accessed))

    operands = (x, shortcut) if with_shortcut else (x,)
    return pl.pallas_call(
        kernel,
        out_shape=jax.ShapeDtypeStruct((N, d_out, L_out), x.dtype),
        grid_spec=pltpu.PrefetchScalarGridSpec(
            num_scalar_prefetch=0,
            grid=(n_steps,),
            in_specs=in_specs,
            out_specs=o_spec,
            scratch_shapes=scratch_shapes),
        compiler_params=pltpu.CompilerParams(
            dimension_semantics=("parallel",),
            vmem_limit_bytes=32 * 1024 * 1024),
        cost_estimate=cost,
    )(*operands, w_flat, b2)


def _reference(x, shortcut, weight, bias, padding, with_shortcut):
    # Pure-JAX reference using lax.conv_general_dilated (NCL layout).
    inp = x + shortcut if with_shortcut else x
    y = jax.lax.conv_general_dilated(
        inp, weight, window_strides=(1,), padding=[(padding, padding)],
        dimension_numbers=("NCH", "OIH", "NCH"))
    return y + bias.reshape(1, -1, 1)


if __name__ == "__main__":
    # Small shapes consistent with ConvEndLayer: Conv1d input is (N, d_in, L).
    N, d_in, d_out, L = 2, 4, 8, 16
    kernel_size, padding = 3, 1

    key = jax.random.PRNGKey(0)
    kx, ks, kw, kb, kx4, ks4 = jax.random.split(key, 6)
    x = jax.random.normal(kx, (N, d_in, L), dtype=jnp.float32)
    shortcut = jax.random.normal(ks, (N, d_in, L), dtype=jnp.float32)
    weight = jax.random.normal(kw, (d_out, d_in, kernel_size), dtype=jnp.float32) * 0.1
    bias = jax.random.normal(kb, (d_out,), dtype=jnp.float32) * 0.1

    ok = True

    # f32 path, with and without the shortcut add.
    for with_shortcut in (True, False):
        y = conv_end_layer(x, shortcut, weight, bias,
                           padding=padding, with_shortcut=with_shortcut)
        y = jax.block_until_ready(y)
        y_ref = _reference(x, shortcut, weight, bias, padding, with_shortcut)
        ok &= bool(jnp.allclose(y, y_ref, atol=1e-4, rtol=1e-4))

    # bf16 MXU-operand path (v6e/v7x feedback), f32 accumulate -> loose tol.
    y16 = conv_end_layer(x, shortcut, weight, bias, padding=padding,
                         with_shortcut=True, matmul_dtype=jnp.bfloat16)
    y16 = jax.block_until_ready(y16)
    y_ref = _reference(x, shortcut, weight, bias, padding, True)
    ok &= bool(jnp.allclose(y16, y_ref, atol=5e-2, rtol=5e-2))

    # Larger batch to exercise the batch-folding path (NB > 1 per grid step).
    N4 = 4
    x4 = jax.random.normal(kx4, (N4, d_in, L), dtype=jnp.float32)
    s4 = jax.random.normal(ks4, (N4, d_in, L), dtype=jnp.float32)
    y4 = conv_end_layer(x4, s4, weight, bias, padding=padding, with_shortcut=True)
    y4 = jax.block_until_ready(y4)
    y4_ref = _reference(x4, s4, weight, bias, padding, True)
    ok &= bool(jnp.allclose(y4, y4_ref, atol=1e-4, rtol=1e-4))

    print("KERNEL_OK" if ok else "KERNEL_MISMATCH")
</pallas_src>

<mosaic_0001>
module attributes {stable_mosaic.version = 11 : i64} {
  func.func @kernel(%arg0: i32, %arg1: memref<1x4x16xf32, #tpu.memory_space<vmem>>, %arg2: memref<1x4x16xf32, #tpu.memory_space<vmem>>, %arg3: memref<8x24xf32, #tpu.memory_space<vmem>>, %arg4: memref<8x1xf32, #tpu.memory_space<vmem>>, %arg5: memref<1x8x16xf32, #tpu.memory_space<vmem>>, %arg6: memref<8x18xf32, #tpu.memory_space<vmem>>, %arg7: memref<24x16xf32, #tpu.memory_space<vmem>>) attributes {dimension_semantics = [#tpu.dimension_semantics<parallel>], iteration_bounds = array<i64: 2>, scalar_prefetch = 0 : i64, scratch_operands = 2 : i64, tpu.core_type = #tpu.core_type<tc>, window_params = [{transform_indices = @transform_0, window_bounds = array<i64: 1, 4, 16>}, {transform_indices = @transform_1, window_bounds = array<i64: 1, 4, 16>}, {pipeline_mode = #tpu.pipeline_mode<synchronous>, transform_indices = @transform_2, window_bounds = array<i64: 8, 24>}, {pipeline_mode = #tpu.pipeline_mode<synchronous>, transform_indices = @transform_3, window_bounds = array<i64: 8, 1>}, {transform_indices = @transform_4, window_bounds = array<i64: 1, 8, 16>}]} {
    %cst = arith.constant 0.000000e+00 : f32
    %0 = vector.broadcast %cst : f32 to vector<8x18xf32>
    %c0 = arith.constant 0 : index
    %c0_0 = arith.constant 0 : index
    %1 = vector.load %arg6[%c0, %c0_0] : memref<8x18xf32, #tpu.memory_space<vmem>>, vector<8x18xf32>
    tpu.vector_store %arg6[%c0, %c0_0], %0 {strides = array<i32>} : memref<8x18xf32, #tpu.memory_space<vmem>>, vector<8x18xf32>,
    %c0_1 = arith.constant 0 : index
    %c0_2 = arith.constant 0 : index
    %c0_3 = arith.constant 0 : index
    %2 = vector.load %arg1[%c0_1, %c0_2, %c0_3] : memref<1x4x16xf32, #tpu.memory_space<vmem>>, vector<1x4x16xf32>
    %3 = vector.shape_cast %2 : vector<1x4x16xf32> to vector<4x16xf32>
    %c0_4 = arith.constant 0 : index
    %c0_5 = arith.constant 0 : index
    %c0_6 = arith.constant 0 : index
    %4 = vector.load %arg2[%c0_4, %c0_5, %c0_6] : memref<1x4x16xf32, #tpu.memory_space<vmem>>, vector<1x4x16xf32>
    %5 = vector.shape_cast %4 : vector<1x4x16xf32> to vector<4x16xf32>
    %6 = arith.addf %3, %5 : vector<4x16xf32>
    %c0_7 = arith.constant 0 : index
    %c1 = arith.constant 1 : index
    %7 = vector.load %arg6[%c0_7, %c1] : memref<8x18xf32, #tpu.memory_space<vmem>>, vector<4x16xf32>
    tpu.vector_store %arg6[%c0_7, %c1], %6 {strides = array<i32>} : memref<8x18xf32, #tpu.memory_space<vmem>>, vector<4x16xf32>,
    %c0_8 = arith.constant 0 : index
    %c0_9 = arith.constant 0 : index
    %8 = vector.load %arg6[%c0_8, %c0_9] : memref<8x18xf32, #tpu.memory_space<vmem>>, vector<8x16xf32>
    %c0_10 = arith.constant 0 : index
    %c0_11 = arith.constant 0 : index
    %9 = vector.load %arg7[%c0_10, %c0_11] : memref<24x16xf32, #tpu.memory_space<vmem>>, vector<8x16xf32>
    tpu.vector_store %arg7[%c0_10, %c0_11], %8 {strides = array<i32>} : memref<24x16xf32, #tpu.memory_space<vmem>>, vector<8x16xf32>,
    %c0_12 = arith.constant 0 : index
    %c1_13 = arith.constant 1 : index
    %10 = vector.load %arg6[%c0_12, %c1_13] : memref<8x18xf32, #tpu.memory_space<vmem>>, vector<8x16xf32>
    %c8 = arith.constant 8 : index
    %c0_14 = arith.constant 0 : index
    %11 = vector.load %arg7[%c8, %c0_14] : memref<24x16xf32, #tpu.memory_space<vmem>>, vector<8x16xf32>
    tpu.vector_store %arg7[%c8, %c0_14], %10 {strides = array<i32>} : memref<24x16xf32, #tpu.memory_space<vmem>>, vector<8x16xf32>,
    %c0_15 = arith.constant 0 : index
    %c2 = arith.constant 2 : index
    %12 = vector.load %arg6[%c0_15, %c2] : memref<8x18xf32, #tpu.memory_space<vmem>>, vector<8x16xf32>
    %c16 = arith.constant 16 : index
    %c0_16 = arith.constant 0 : index
    %13 = vector.load %arg7[%c16, %c0_16] : memref<24x16xf32, #tpu.memory_space<vmem>>, vector<8x16xf32>
    tpu.vector_store %arg7[%c16, %c0_16], %12 {strides = array<i32>} : memref<24x16xf32, #tpu.memory_space<vmem>>, vector<8x16xf32>,
    %c0_17 = arith.constant 0 : index
    %c0_18 = arith.constant 0 : index
    %14 = vector.load %arg3[%c0_17, %c0_18] : memref<8x24xf32, #tpu.memory_space<vmem>>, vector<8x24xf32>
    %c0_19 = arith.constant 0 : index
    %c0_20 = arith.constant 0 : index
    %15 = vector.load %arg7[%c0_19, %c0_20] : memref<24x16xf32, #tpu.memory_space<vmem>>, vector<24x16xf32>
    %cst_21 = arith.constant dense<0.000000e+00> : vector<8x16xf32>
    %16 = tpu.matmul %14, %15, %cst_21 {dimension_numbers = #tpu.dot_dimension_numbers<[1], [0], [0], [1], [0, 0, 1, 1], [], []>} : vector<8x24xf32>, vector<24x16xf32>, vector<8x16xf32> -> vector<8x16xf32>
    %c0_22 = arith.constant 0 : index
    %c0_23 = arith.constant 0 : index
    %17 = vector.load %arg4[%c0_22, %c0_23] : memref<8x1xf32, #tpu.memory_space<vmem>>, vector<8x1xf32>
    %18 = vector.broadcast %17 : vector<8x1xf32> to vector<8x16xf32>
    %19 = arith.addf %16, %18 : vector<8x16xf32>
    %c0_24 = arith.constant 0 : index
    %c0_25 = arith.constant 0 : index
    %c0_26 = arith.constant 0 : index
    %20 = vector.load %arg5[%c0_24, %c0_25, %c0_26] : memref<1x8x16xf32, #tpu.memory_space<vmem>>, vector<1x8x16xf32>
    %21 = vector.shape_cast %20 : vector<1x8x16xf32> to vector<8x16xf32>
    %22 = vector.shape_cast %19 : vector<8x16xf32> to vector<1x8x16xf32>
    tpu.vector_store %arg5[%c0_24, %c0_25, %c0_26], %22 {strides = array<i32>} : memref<1x8x16xf32, #tpu.memory_space<vmem>>, vector<1x8x16xf32>,
    return
  }
  func.func @transform_0(%arg0: i32) -> (i32, i32, i32) {
    %c0_i32 = arith.constant 0 : i32
    %c0_i32_0 = arith.constant 0 : i32
    %c0_i32_1 = arith.constant 0 : i32
    return %arg0, %c0_i32, %c0_i32_0 : i32, i32, i32
  }
  func.func @transform_1(%arg0: i32) -> (i32, i32, i32) {
    %c0_i32 = arith.constant 0 : i32
    %c0_i32_0 = arith.constant 0 : i32
    %c0_i32_1 = arith.constant 0 : i32
    return %arg0, %c0_i32, %c0_i32_0 : i32, i32, i32
  }
  func.func @transform_2(%arg0: i32) -> (i32, i32) {
    %c0_i32 = arith.constant 0 : i32
    %c0_i32_0 = arith.constant 0 : i32
    %c0_i32_1 = arith.constant 0 : i32
    return %c0_i32, %c0_i32_0 : i32, i32
  }
  func.func @transform_3(%arg0: i32) -> (i32, i32) {
    %c0_i32 = arith.constant 0 : i32
    %c0_i32_0 = arith.constant 0 : i32
    %c0_i32_1 = arith.constant 0 : i32
    return %c0_i32, %c0_i32_0 : i32, i32
  }
  func.func @transform_4(%arg0: i32) -> (i32, i32, i32) {
    %c0_i32 = arith.constant 0 : i32
    %c0_i32_0 = arith.constant 0 : i32
    %c0_i32_1 = arith.constant 0 : i32
    return %arg0, %c0_i32, %c0_i32_0 : i32, i32, i32
  }
}

</mosaic_0001>

<llo_original>
// kernel: conv_end_layer.1
$region0: #{conv_end_layer.1}
  #allocation0 [shape = 'u32[]', space=smem, size = 0x4, offset = 0x4, fixed_abs, tag = 'smem constant byte address 0x4 - core index']
  #allocation1 [shape = 'u32[144,128]{1,0:T(1,128)}', space=vmem, size = 0x12000, scoped, tag = 'internal scratch']
  #allocation2 [shape = 'f32[8,18]{1,0:T(8,128)}', space=vmem, size = 0x1000, scoped, tag = 'scratch operand']
  #allocation3 [shape = 'f32[24,16]{1,0:T(8,128)}', space=vmem, size = 0x3000, scoped, tag = 'scratch operand']
  %s0 = inlined_call_operand.vmem [shape: f32[2,4,16], index: 0, kind: input, shape index: {}]
  %s1 = inlined_call_operand.vmem [shape: f32[2,4,16], index: 1, kind: input, shape index: {}]
  %s2 = inlined_call_operand.vmem [shape: f32[8,24], index: 2, kind: input, shape index: {}]
  %s3 = inlined_call_operand.vmem [shape: f32[8,1], index: 3, kind: input, shape index: {}]
  %s4 = inlined_call_operand.hbm [shape: f32[2,8,16], index: 4, kind: output, shape index: {}]
  %s5 = sld [smem:[#allocation0]]
  $region49: #{conv_end_layer.1} parent=0
    _
  %s7 = ssub.s32 1, %s5
  %s8 = scalar_select 0, %s7, %s5
  $region1: #{conv_end_layer.1} parent=0
    #allocation4 [shape = 'u8[8192]{0}', space=vmem, size = 0x2000, scoped, tag = 'output window, operand 0']
    #allocation5 [shape = 's32[2]{0}', space=sflag, size = 0x8, scoped, tag = 'scoped memory for conv_end_layer.1']
    %9 = vsyncpa [#allocation5], 0
    %s10 = scalar_lea.sflag [#allocation5], 1
    %11 = vsyncpa %s10, 0
    loop: start=0, step=1, limit=4
    $region2: #{conv_end_layer.1} parent=1 // loop_pre_header
      _
    $region3: #{conv_end_layer.1} parent=1 // loop_header
      %s13 = sphi 0, %s17
      %p14 = scmp.ge.s32.totalorder %s13, 4
      %s23 = sphi 0, %s25
      %s26 = sphi 0, %s23
      %s27 = sphi 0, %s26
      %s43 = sphi 0, %s27
      %s49 = sphi 0, %s51
      %s52 = sphi 0, %s49
      %s53 = sphi 0, %s52
      %s69 = sphi 0, %s53
      %s73 = sphi 0, %s73
      %s75 = sphi 0, %s73
      %s76 = sphi 0, %s75
      %s90 = sphi 0, %s76
      %s94 = sphi 0, %s94
      %s96 = sphi 0, %s94
      %s97 = sphi 0, %s96
      %s111 = sphi 0, %s97
      %s117 = sphi 0, %s119
      %s120 = sphi 0, %s117
      %s121 = sphi 0, %s120
      %s137 = sphi 0, %s121
    $region4: #{conv_end_layer.1} parent=1 // loop_header_branch
      %16 = sbr.rel (%p14) target = $region8
    $region5: #{conv_end_layer.1} parent=1 // loop_body
      %s18 = ssub.s32 %s13, 1
      %s19 = ssub.s32 %s13, 2
      %s20 = sadd.s32 %s13, 1
      %s21 = ssub.s32 %s13, %s20
      %p22 = scmp.eq.s32.totalorder %s21, 0
      %s24 = sadd.s32 %s23, 1
      %s25 = scalar_select %p22, %s23, %s24
      %p28 = pneg %p22
      %p29 = scmp.eq.s32.totalorder %s13, 1
      %p30 = por %p28, %p29
      %p31 = scmp.ne.s32.totalorder %s23, %s26
      %p32 = scmp.eq.s32.totalorder %s13, 0
      %p33 = por %p31, %p32
      %p34 = scmp.ne.s32.totalorder %s23, %s26
      %p35 = scmp.eq.s32.totalorder %s18, 1
      %p36 = por %p34, %p35
      %p37 = scmp.ne.s32.totalorder %s26, %s27
      %p38 = scmp.eq.s32.totalorder %s18, 0
      %p39 = por %p37, %p38
      %p40 = scmp.ne.s32.totalorder %s26, %s27
      %p41 = scmp.eq.s32.totalorder %s19, 1
      %p42 = por %p40, %p41
      %p44 = scmp.ne.s32.totalorder %s27, %s43
      %p45 = scmp.eq.s32.totalorder %s19, 0
      %p46 = por %p44, %p45
      %s47 = ssub.s32 %s13, %s20
      %p48 = scmp.eq.s32.totalorder %s47, 0
      %s50 = sadd.s32 %s49, 1
      %s51 = scalar_select %p48, %s49, %s50
      %p54 = pneg %p48
      %p55 = scmp.eq.s32.totalorder %s13, 1
      %p56 = por %p54, %p55
      %p57 = scmp.ne.s32.totalorder %s49, %s52
      %p58 = scmp.eq.s32.totalorder %s13, 0
      %p59 = por %p57, %p58
      %p60 = scmp.ne.s32.totalorder %s49, %s52
      %p61 = scmp.eq.s32.totalorder %s18, 1
      %p62 = por %p60, %p61
      %p63 = scmp.ne.s32.totalorder %s52, %s53
      %p64 = scmp.eq.s32.totalorder %s18, 0
      %p65 = por %p63, %p64
      %p66 = scmp.ne.s32.totalorder %s52, %s53
      %p67 = scmp.eq.s32.totalorder %s19, 1
      %p68 = por %p66, %p67
      %p70 = scmp.ne.s32.totalorder %s53, %s69
      %p71 = scmp.eq.s32.totalorder %s19, 0
      %p72 = por %p70, %p71
      %s74 = sadd.s32 %s73, 1
      %p77 = scmp.eq.s32.totalorder %s13, 1
      %p78 = scmp.ne.s32.totalorder %s73, %s75
      %p79 = scmp.eq.s32.totalorder %s13, 0
      %p80 = por %p78, %p79
      %p81 = scmp.ne.s32.totalorder %s73, %s75
      %p82 = scmp.eq.s32.totalorder %s18, 1
      %p83 = por %p81, %p82
      %p84 = scmp.ne.s32.totalorder %s75, %s76
      %p85 = scmp.eq.s32.totalorder %s18, 0
      %p86 = por %p84, %p85
      %p87 = scmp.ne.s32.totalorder %s75, %s76
      %p88 = scmp.eq.s32.totalorder %s19, 1
      %p89 = por %p87, %p88
      %p91 = scmp.ne.s32.totalorder %s76, %s90
      %p92 = scmp.eq.s32.totalorder %s19, 0
      %p93 = por %p91, %p92
      %s95 = sadd.s32 %s94, 1
      %p98 = scmp.eq.s32.totalorder %s13, 1
      %p99 = scmp.ne.s32.totalorder %s94, %s96
      %p100 = scmp.eq.s32.totalorder %s13, 0
      %p101 = por %p99, %p100
      %p102 = scmp.ne.s32.totalorder %s94, %s96
      %p103 = scmp.eq.s32.totalorder %s18, 1
      %p104 = por %p102, %p103
      %p105 = scmp.ne.s32.totalorder %s96, %s97
      %p106 = scmp.eq.s32.totalorder %s18, 0
      %p107 = por %p105, %p106
      %p108 = scmp.ne.s32.totalorder %s96, %s97
      %p109 = scmp.eq.s32.totalorder %s19, 1
      %p110 = por %p108, %p109
      %p112 = scmp.ne.s32.totalorder %s97, %s111
      %p113 = scmp.eq.s32.totalorder %s19, 0
      %p114 = por %p112, %p113
      %s115 = ssub.s32 %s13, %s20
      %p116 = scmp.eq.s32.totalorder %s115, 0
      %s118 = sadd.s32 %s117, 1
      %s119 = scalar_select %p116, %s117, %s118
      %p122 = pneg %p116
      %p123 = scmp.eq.s32.totalorder %s13, 1
      %p124 = por %p122, %p123
      %p125 = scmp.ne.s32.totalorder %s117, %s120
      %p126 = scmp.eq.s32.totalorder %s13, 0
      %p127 = por %p125, %p126
      %p128 = scmp.ne.s32.totalorder %s117, %s120
      %p129 = scmp.eq.s32.totalorder %s18, 1
      %p130 = por %p128, %p129
      %p131 = scmp.ne.s32.totalorder %s120, %s121
      %p132 = scmp.eq.s32.totalorder %s18, 0
      %p133 = por %p131, %p132
      %p134 = scmp.ne.s32.totalorder %s120, %s121
      %p135 = scmp.eq.s32.totalorder %s19, 1
      %p136 = por %p134, %p135
      %p138 = scmp.ne.s32.totalorder %s121, %s137
      %p139 = scmp.eq.s32.totalorder %s19, 0
      %p140 = por %p138, %p139
      %p141 = scmp.le.s32.totalorder 1, %s13
      %p142 = scmp.lt.s32.totalorder %s13, 3
      %p143 = pnand %p141, %p142
      %p144 = pneg %p143
      // Predicated region
      $region9: #{conv_end_layer.1} parent=5 // pred_check
        _
      $region10: #{conv_end_layer.1} parent=5 // pred_check_branch
        %146 = sbr.rel (%p143) target = $region12
      $region11: #{conv_end_layer.1} parent=5 // pred_region
        %s147 = ssub.s32 %s13, 1
        // Predicated region
        $region13: #{conv_end_layer.1} parent=11 // pred_check
          %p148 = pneg %p86
        $region14: #{conv_end_layer.1} parent=11 // pred_check_branch
          %150 = sbr.rel (%p148) target = $region16
        $region15: #{conv_end_layer.1} parent=11 // pred_region
          _
        $region16: #{conv_end_layer.1} parent=11 // pred_fallthru
          _
        // Predicated region
        $region17: #{conv_end_layer.1} parent=11 // pred_check
          %p151 = pneg %p107
        $region18: #{conv_end_layer.1} parent=11 // pred_check_branch
          %153 = sbr.rel (%p151) target = $region20
        $region19: #{conv_end_layer.1} parent=11 // pred_region
          _
        $region20: #{conv_end_layer.1} parent=11 // pred_fallthru
          _
      $region12: #{conv_end_layer.1} parent=5 // pred_fallthru
        _
      %p154 = scmp.lt.s32.totalorder %s13, 2
      // Predicated region
      $region21: #{conv_end_layer.1} parent=5 // pred_check
        %p155 = pneg %p154
      $region22: #{conv_end_layer.1} parent=5 // pred_check_branch
        %157 = sbr.rel (%p155) target = $region24
      $region23: #{conv_end_layer.1} parent=5 // pred_region
        // Predicated region
        $region25: #{conv_end_layer.1} parent=23 // pred_check
          %p158 = pneg %p33
        $region26: #{conv_end_layer.1} parent=23 // pred_check_branch
          %160 = sbr.rel (%p158) target = $region28
        $region27: #{conv_end_layer.1} parent=23 // pred_region
          %p161 = scmp.lt.s32.totalorder %s13, 1
          %s162 = scalar_select %p161, %s13, 1
          %s163 = smul.addr %s162, 4
          %s164 = scalar_lea.vmem %s0, %s163
        $region28: #{conv_end_layer.1} parent=23 // pred_fallthru
          _
        // Predicated region
        $region29: #{conv_end_layer.1} parent=23 // pred_check
          %p165 = pneg %p59
        $region30: #{conv_end_layer.1} parent=23 // pred_check_branch
          %167 = sbr.rel (%p165) target = $region32
        $region31: #{conv_end_layer.1} parent=23 // pred_region
          %p168 = scmp.lt.s32.totalorder %s13, 1
          %s169 = scalar_select %p168, %s13, 1
          %s170 = smul.addr %s169, 4
          %s171 = scalar_lea.vmem %s1, %s170
        $region32: #{conv_end_layer.1} parent=23 // pred_fallthru
          _
      $region24: #{conv_end_layer.1} parent=5 // pred_fallthru
        _
      %p172 = scmp.le.s32.totalorder 1, %s13
      %p173 = scmp.lt.s32.totalorder %s13, 3
      %p174 = pnand %p172, %p173
      %p175 = pneg %p174
      // Predicated region
      $region33: #{conv_end_layer.1} parent=5 // pred_check
        _
      $region34: #{conv_end_layer.1} parent=5 // pred_check_branch
        %177 = sbr.rel (%p174) target = $region36
      $region35: #{conv_end_layer.1} parent=5 // pred_region
        %s178 = ssub.s32 %s13, 1
        %p179 = scmp.lt.s32.totalorder %s18, 1
        %s180 = scalar_select %p179, %s18, 1
        %s181 = smul.addr %s180, 4
        %s182 = scalar_lea.vmem %s0, %s181
        %p183 = pneg %p39
        %p184 = pneg %p36
        %p185 = scmp.lt.s32.totalorder %s18, 1
        %s186 = scalar_select %p185, %s18, 1
        %s187 = smul.addr %s186, 4
        %s188 = scalar_lea.vmem %s1, %s187
        %p189 = pneg %p65
        %p190 = pneg %p62
        %p191 = pneg %p86
        %p192 = pneg %p83
        %p193 = pneg %p107
        %p194 = pneg %p104
        %p195 = pneg %p133
        %p196 = pneg %p130
        %s197 = sand.u32 %s120, 1
        %s198 = scalar_lea.sflag [#allocation5], %s197
        %s199 = sand.u32 %s120, 1
        %s200 = smul.addr %s199, 8
        %s201 = scalar_lea.vmem [#allocation4], %s200
        %p202 = scmp.lt.s32.totalorder %s18, 1
        %s203 = scalar_select %p202, %s18, 1
        %s204 = smul.addr %s203, 4
        %s205 = scalar_lea.vmem %s0, %s204
        %p206 = scmp.lt.s32.totalorder %s18, 1
        %s207 = scalar_select %p206, %s18, 1
        %s208 = smul.addr %s207, 4
        %s209 = scalar_lea.vmem %s1, %s208
        %vm210 = vcmask 146432
        %211 = vst.msk [vmem:[#allocation2] sm:$0xff] %vm210, 0.0
        %v212 = vld [vmem:[%s205] sm:$0xf]
        %v213 = vld [vmem:[%s209] sm:$0xf]
        %v214 = vadd.f32 %v212, %v213
        %216 = vrot.lane.b32.xlu0 %v214, 1
        %v217 = vpop.permute.xlu0 %216
        %vm219 = vcmask 134152
        %220 = vst.msk [vmem:[#allocation2] sm:$0xf] %vm219, %v217
        %v221 = vld [vmem:[#allocation2] sm:$0xff]
        %vm222 = vcmask 130048
        %223 = vst.msk [vmem:[#allocation3] sm:$0xff] %vm222, %v221
        %v224 = vld [vmem:[#allocation2] sm:$0xff]
        %226 = vrot.lane.b32.xlu0 %v224, 127
        %v227 = vpop.permute.xlu0 %226
        %229 = vst.msk [vmem:[#allocation3 + $0x8] sm:$0xff] %vm222, %v227
        %v230 = vld [vmem:[#allocation2] sm:$0xff]
        %232 = vrot.lane.b32.xlu0 %v230, 126
        %v233 = vpop.permute.xlu0 %232
        %235 = vst.msk [vmem:[#allocation3 + $0x10] sm:$0xff] %vm222, %v233
        %v236 = vld [vmem:[%s2] sm:$0xff]
        %v237 = vld [vmem:[#allocation3] sm:$0xff]
        %v238 = vld [vmem:[#allocation3 + $0x8] sm:$0xff]
        %v239 = vld [vmem:[#allocation3 + $0x10] sm:$0xff]
        %v240 = vld [vmem:[%s3] sm:$0xff]
        %242 = vset.pattern.permute.xlu0 0
        %243 = vperm.xlu0 %242, %v240
        %v244 = vpop.permute.xlu0 %243
        %vm246 = vcmask 195584
        %v248 = vsel %vm246, %v236, 0
        %250 = vmatprep.subr.mxu0 0.0
        %251 = vmatpush1.msra.mxu0 %v237
        %252 = vmatprep.subr.mxu0 0.0
        %253 = vmatpush1.msra.mxu0 %v238
        %254 = vmatprep.subr.mxu0 0.0
        %255 = vmatpush1.msra.mxu0 %v239
        %256 = vmatprep.subr.mxu0 0.0
        %257 = vmatpush1.msra.mxu0 0.0
        %258 = vmatprep.subr.mxu0 0.0
        %259 = vmatpush1.msra.mxu0 0.0
        %260 = vmatprep.subr.mxu0 0.0
        %261 = vmatpush1.msra.mxu0 0.0
        %262 = vmatprep.subr.mxu0 0.0
        %263 = vmatpush1.msra.mxu0 0.0
        %264 = vmatprep.subr.mxu0 0.0
        %265 = vmatpush1.msra.mxu0 0.0
        %266 = vmatprep.subr.mxu0 0.0
        %267 = vmatpush1.msra.mxu0 0.0
        %268 = vmatprep.subr.mxu0 0.0
        %269 = vmatpush1.msra.mxu0 0.0
        %270 = vmatprep.subr.mxu0 0.0
        %271 = vmatpush1.msra.mxu0 0.0
        %272 = vmatprep.subr.mxu0 0.0
        %273 = vmatpush1.msra.mxu0 0.0
        %274 = vmatprep.subr.mxu0 0.0
        %275 = vmatpush1.msra.mxu0 0.0
        %276 = vmatprep.subr.mxu0 0.0
        %277 = vmatpush1.msra.mxu0 0.0
        %278 = vmatprep.subr.mxu0 0.0
        %279 = vmatpush1.msra.mxu0 0.0
        %280 = vmatprep.subr.mxu0 0.0
        %281 = vmatpush1.msra.mxu0 0.0
        %282 = vmatprep.subr.mxu0 0.0
        %283 = vmatpush1.msra.mxu0 0.0
        %284 = vmatprep.subr.mxu0 0.0
        %285 = vmatpush1.msra.mxu0 0.0
        %286 = vmatprep.subr.mxu0 0.0
        %287 = vmatpush1.msra.mxu0 0.0
        %288 = vmatprep.subr.mxu0 0.0
        %289 = vmatpush1.msra.mxu0 0.0
        %290 = vmatprep.subr.mxu0 0.0
        %291 = vmatpush1.msra.mxu0 0.0
        %292 = vmatprep.subr.mxu0 0.0
        %293 = vmatpush1.msra.mxu0 0.0
        %294 = vmatprep.subr.mxu0 0.0
        %295 = vmatpush1.msra.mxu0 0.0
        %296 = vmatprep.subr.mxu0 0.0
        %297 = vmatpush1.msra.mxu0 0.0
        %298 = vmatprep.subr.mxu0 0.0
        %299 = vmatpush1.msra.mxu0 0.0
        %300 = vmatprep.subr.mxu0 0.0
        %301 = vmatpush1.msra.mxu0 0.0
        %302 = vmatprep.subr.mxu0 0.0
        %303 = vmatpush1.msra.mxu0 0.0
        %304 = vmatprep.subr.mxu0 0.0
        %305 = vmatpush1.msra.mxu0 0.0
        %306 = vmatprep.subr.mxu0 0.0
        %307 = vmatpush1.msra.mxu0 0.0
        %308 = vmatprep.subr.mxu0 0.0
        %309 = vmatpush1.msra.mxu0 0.0
        %310 = vmatprep.subr.mxu0 0.0
        %311 = vmatpush1.msra.mxu0 0.0
        %312 = vmatprep.subr.mxu0 0.0
        %313 = vmatpush1.msra.mxu0 0.0
        %314 = vmatprep.mubr.f32.mxu0 0.0
        %315 = vmatmul.mubr.f32.gmra.mrb[0].mxu0 %v248
        %v316 = vpop.f32.mrb[0].mxu0
        %v317 = vadd.f32 %v244, %v316
        %v318 = vpop.f32.mrb[0].mxu0
        %319 = vdwg.mxu0
        %320 = vst.msk [vmem:[%s201] sm:$0xff] %vm222, %v317
        %s321 = sand.u32 %s120, 1
        %s322 = scalar_lea.sflag [#allocation5], %s321
        %s323 = sand.u32 %s120, 1
        %s324 = smul.addr %s323, 8
        %s325 = scalar_lea.vmem [#allocation4], %s324
        // Predicated region
        $region37: #{conv_end_layer.1} parent=35 // pred_check
          %p326 = pneg %p130
        $region38: #{conv_end_layer.1} parent=35 // pred_check_branch
          %328 = sbr.rel (%p326) target = $region40
        $region39: #{conv_end_layer.1} parent=35 // pred_region
          %s330 = ssub.s32 128, 128
          %331 = vsyncadd %s322, %s330
          %s332 = smul.addr %s18, 128
          %s333 = scalar_lea.hbm %s4, %s332
          %s335 = sshll.u32 %s325, 4
          %s336 = int_to_ptr.vmem [resolvable:$true] %s335
          %338 = dma.vmem_to_hbm [thread:$0]  %s336, 128, %s333, %s322
        $region40: #{conv_end_layer.1} parent=35 // pred_fallthru
          _
      $region36: #{conv_end_layer.1} parent=5 // pred_fallthru
        _
      %p339 = scmp.le.s32.totalorder 2, %s13
      // Predicated region
      $region41: #{conv_end_layer.1} parent=5 // pred_check
        %p340 = pneg %p339
      $region42: #{conv_end_layer.1} parent=5 // pred_check_branch
        %342 = sbr.rel (%p340) target = $region44
      $region43: #{conv_end_layer.1} parent=5 // pred_region
        %s343 = ssub.s32 %s13, 2
        // Predicated region
        $region45: #{conv_end_layer.1} parent=43 // pred_check
          %p344 = pneg %p136
        $region46: #{conv_end_layer.1} parent=43 // pred_check_branch
          %346 = sbr.rel (%p344) target = $region48
        $region47: #{conv_end_layer.1} parent=43 // pred_region
          %s347 = sand.u32 %s121, 1
          %s348 = scalar_lea.sflag [#allocation5], %s347
          %s349 = sand.u32 %s121, 1
          %s350 = smul.addr %s349, 8
          %s351 = scalar_lea.vmem [#allocation4], %s350
          %352 = dma.done %s348, 128
        $region48: #{conv_end_layer.1} parent=43 // pred_fallthru
          _
      $region44: #{conv_end_layer.1} parent=5 // pred_fallthru
        _
    $region6: #{conv_end_layer.1} parent=1 // loop_footer
      %s17 = sadd.s32 1, %s13
    $region7: #{conv_end_layer.1} parent=1 // loop_footer_branch
      %12 = sbr.rel target = $region3
    $region8: #{conv_end_layer.1} parent=1 // loop_exit
      _
    %353 = vsyncpa [#allocation5], 1
    %s354 = scalar_lea.sflag [#allocation5], 1
    %355 = vsyncpa %s354, 1

</llo_original>
